<compile_context>
chip_gen: v6e
topology: v6e:2x2x1
jax: 0.10.0
libtpu: 0.0.40
codegen_flags: <defaults>
</compile_context>

<pallas_src>
import jax
import jax.numpy as jnp
from jax.experimental import pallas as pl
from jax.experimental.pallas import tpu as pltpu


_ROW_TILES = (2048, 1024, 512, 256, 128, 64, 32, 16, 8)
_COL_TILES = (512, 256, 128)

# Conservative budget for the two double-buffered input tiles (bytes).
_INPUT_VMEM_BUDGET = 12 * 1024 * 1024


def _pick_col_tile(C):
    for c in _COL_TILES:
        if C % c == 0:
            return c
    return C  # full-extent block is always legal


def _pick_row_tile(R, tc, itemsize):
    # 2 inputs x 2 pipeline buffers x (tr, tc) tile.
    def fits(tr):
        return 4 * tr * tc * itemsize <= _INPUT_VMEM_BUDGET

    for tr in _ROW_TILES:
        if R % tr == 0 and fits(tr):
            return tr, False
    if R <= 2048 and fits(R):
        return R, False          # single full-R block is legal
    # Need padding: pick the largest fitting candidate.
    for tr in _ROW_TILES:
        if fits(tr):
            return tr, True
    return 8, True


def _myloss_kernel(xp_ref, xt_ref, dx_out_ref, ssq_out_ref,
                   dx_acc, ssq_acc, prev_ref):
    r = pl.program_id(1)                 # row-tile index (reduction axis)
    tr = xp_ref.shape[0]                 # static tile height

    xp = xp_ref[...].astype(jnp.float32)     # (TR, TC)
    xt = xt_ref[...].astype(jnp.float32)     # (TR, TC)

    @pl.when(r == 0)
    def _():
        dx_acc[...] = jnp.zeros_like(dx_acc)
        ssq_acc[...] = jnp.zeros_like(ssq_acc)
        prev_ref[...] = xp[0:1, :]       # makes the first tile's boundary term 0

    first_row = xp[0:1, :]
    last_row = xp[tr - 1:tr, :]
    boundary = jnp.abs(first_row - prev_ref[...])   # |x[t0] - x[prev_tile_last]|

    if tr > 1:
        # Within-tile TV via an XLU rotation: either roll direction yields the
        # same multiset of |x[i]-x[i+/-1]| terms plus exactly one wrap term
        # |x[0]-x[tr-1]|, which we subtract, so this is direction-robust.
        shifted = pltpu.roll(xp, shift=1, axis=0)
        tv = jnp.sum(jnp.abs(xp - shifted), axis=0, keepdims=True)
        wrap = jnp.abs(first_row - last_row)
        dx_acc[...] += tv - wrap + boundary
    else:
        dx_acc[...] += boundary
    prev_ref[...] = last_row

    diff = xp - xt
    ssq_acc[...] += jnp.sum(diff * diff, axis=0, keepdims=True)

    @pl.when(r == pl.num_programs(1) - 1)
    def _():
        dx_out_ref[...] = dx_acc[...]
        ssq_out_ref[...] = ssq_acc[...]


def myloss(x_pre, x_true, lamda):
    """Pallas equivalent of myloss(lamda).forward(x_pre, x_true) for 2-D inputs."""
    assert x_pre.shape == x_true.shape and x_pre.ndim == 2
    R, C = x_pre.shape
    itemsize = jnp.dtype(x_pre.dtype).itemsize

    # --- column tile first (multiple of 128 or full-C), then row tile --------
    tc = _pick_col_tile(C)
    tr, needs_pad = _pick_row_tile(R, tc, itemsize)

    if needs_pad:
        pad = (-R) % tr
        if pad:
            # Pad BOTH arrays with x_pre's last row: padded rows contribute 0
            # to the TV term and 0 to the sum of squares.
            pad_rows = jnp.broadcast_to(x_pre[-1:], (pad, C))
            x_pre = jnp.concatenate([x_pre, pad_rows.astype(x_pre.dtype)], axis=0)
            x_true = jnp.concatenate([x_true, pad_rows.astype(x_true.dtype)], axis=0)
    rp = x_pre.shape[0]

    nr = rp // tr
    nc = C // tc

    cost = pl.CostEstimate(
        flops=int(5 * rp * C),
        transcendentals=0,
        bytes_accessed=int(2 * rp * C * itemsize + 2 * C * 4),
    )

    dx, ssq = pl.pallas_call(
        _myloss_kernel,
        out_shape=(
            jax.ShapeDtypeStruct((1, C), jnp.float32),   # per-feature TV sum
            jax.ShapeDtypeStruct((1, C), jnp.float32),   # per-lane partial ssq
        ),
        grid_spec=pltpu.PrefetchScalarGridSpec(
            num_scalar_prefetch=0,
            grid=(nc, nr),                               # rows innermost (reduction)
            in_specs=[
                pl.BlockSpec((tr, tc), lambda c, r: (r, c)),
                pl.BlockSpec((tr, tc), lambda c, r: (r, c)),
            ],
            out_specs=[
                pl.BlockSpec((1, tc), lambda c, r: (0, c)),
                pl.BlockSpec((1, tc), lambda c, r: (0, c)),
            ],
            scratch_shapes=[
                pltpu.VMEM((1, tc), jnp.float32),        # TV accumulator
                pltpu.VMEM((1, tc), jnp.float32),        # sum-of-squares accumulator
                pltpu.VMEM((1, tc), jnp.float32),        # carried previous row
            ],
        ),
        compiler_params=pltpu.CompilerParams(
            dimension_semantics=("parallel", "arbitrary")),
        cost_estimate=cost,
    )(x_pre, x_true)

    # Tiny finalize in plain JAX: global sum + sqrt + broadcast-add.
    dist = jnp.sqrt(jnp.sum(ssq))
    return (lamda * dx[0] + dist).astype(jnp.float32)


def _myloss_ref(x_pre, x_true, lamda):
    dx = jnp.sum(jnp.abs(x_pre[1:] - x_pre[:-1]), axis=0)
    dist = jnp.sqrt(jnp.sum((x_pre.astype(jnp.float32)
                             - x_true.astype(jnp.float32)) ** 2))
    return lamda * dx.astype(jnp.float32) + dist


if __name__ == "__main__":
    key = jax.random.PRNGKey(0)
    lamda = 0.1
    ok = True

    # Case 1: multi-tile (3 row tiles of 16, 3 column tiles of 128) exercises
    # the cross-tile boundary carry and the parallel column axis.
    # Case 2: indivisible dims exercise the full-extent block fallback.
    for (R, C) in ((48, 384), (50, 200)):
        k1, k2, key = jax.random.split(key, 3)
        x_pre = jax.random.normal(k1, (R, C), dtype=jnp.float32)
        x_true = jax.random.normal(k2, (R, C), dtype=jnp.float32)

        loss = jax.block_until_ready(myloss(x_pre, x_true, lamda))
        ref = _myloss_ref(x_pre, x_true, lamda)

        ok &= loss.shape == (C,)
        ok &= bool(jnp.allclose(loss, ref, rtol=1e-5, atol=1e-3))

    assert ok
    print("KERNEL_OK")
</pallas_src>

<mosaic_0001>
module attributes {stable_mosaic.version = 11 : i64} {
  func.func @_myloss_kernel(%arg0: i32, %arg1: i32, %arg2: memref<16x128xf32, #tpu.memory_space<vmem>>, %arg3: memref<16x128xf32, #tpu.memory_space<vmem>>, %arg4: memref<1x128xf32, #tpu.memory_space<vmem>>, %arg5: memref<1x128xf32, #tpu.memory_space<vmem>>, %arg6: memref<1x128xf32, #tpu.memory_space<vmem>>, %arg7: memref<1x128xf32, #tpu.memory_space<vmem>>, %arg8: memref<1x128xf32, #tpu.memory_space<vmem>>) attributes {dimension_semantics = [#tpu.dimension_semantics<parallel>, #tpu.dimension_semantics<arbitrary>], iteration_bounds = array<i64: 3, 3>, scalar_prefetch = 0 : i64, scratch_operands = 3 : i64, tpu.core_type = #tpu.core_type<tc>, window_params = [{transform_indices = @transform_0, window_bounds = array<i64: 16, 128>}, {transform_indices = @transform_1, window_bounds = array<i64: 16, 128>}, {transform_indices = @transform_2, window_bounds = array<i64: 1, 128>}, {transform_indices = @transform_3, window_bounds = array<i64: 1, 128>}]} {
    %c0 = arith.constant 0 : index
    %c0_0 = arith.constant 0 : index
    %0 = vector.load %arg2[%c0, %c0_0] : memref<16x128xf32, #tpu.memory_space<vmem>>, vector<16x128xf32>
    %c0_1 = arith.constant 0 : index
    %c0_2 = arith.constant 0 : index
    %1 = vector.load %arg3[%c0_1, %c0_2] : memref<16x128xf32, #tpu.memory_space<vmem>>, vector<16x128xf32>
    %c0_i32 = arith.constant 0 : i32
    %2 = arith.cmpi eq, %arg1, %c0_i32 : i32
    %3 = arith.extui %2 : i1 to i32
    %c0_i32_3 = arith.constant 0 : i32
    %4 = arith.cmpi ne, %3, %c0_i32_3 : i32
    scf.if %4 {
      %cst_18 = arith.constant 0.000000e+00 : f32
      %33 = vector.broadcast %cst_18 : f32 to vector<1x128xf32>
      %c0_19 = arith.constant 0 : index
      %c0_20 = arith.constant 0 : index
      %34 = vector.load %arg6[%c0_19, %c0_20] : memref<1x128xf32, #tpu.memory_space<vmem>>, vector<1x128xf32>
      tpu.vector_store %arg6[%c0_19, %c0_20], %33 {strides = array<i32>} : memref<1x128xf32, #tpu.memory_space<vmem>>, vector<1x128xf32>,
      %cst_21 = arith.constant 0.000000e+00 : f32
      %35 = vector.broadcast %cst_21 : f32 to vector<1x128xf32>
      %c0_22 = arith.constant 0 : index
      %c0_23 = arith.constant 0 : index
      %36 = vector.load %arg7[%c0_22, %c0_23] : memref<1x128xf32, #tpu.memory_space<vmem>>, vector<1x128xf32>
      tpu.vector_store %arg7[%c0_22, %c0_23], %35 {strides = array<i32>} : memref<1x128xf32, #tpu.memory_space<vmem>>, vector<1x128xf32>,
      %37 = vector.extract_strided_slice %0 {offsets = [0, 0], sizes = [1, 128], strides = [1, 1]} : vector<16x128xf32> to vector<1x128xf32>
      %c0_24 = arith.constant 0 : index
      %c0_25 = arith.constant 0 : index
      %38 = vector.load %arg8[%c0_24, %c0_25] : memref<1x128xf32, #tpu.memory_space<vmem>>, vector<1x128xf32>
      tpu.vector_store %arg8[%c0_24, %c0_25], %37 {strides = array<i32>} : memref<1x128xf32, #tpu.memory_space<vmem>>, vector<1x128xf32>,
    } else {
    }
    %5 = vector.extract_strided_slice %0 {offsets = [0, 0], sizes = [1, 128], strides = [1, 1]} : vector<16x128xf32> to vector<1x128xf32>
    %6 = vector.extract_strided_slice %0 {offsets = [15, 0], sizes = [1, 128], strides = [1, 1]} : vector<16x128xf32> to vector<1x128xf32>
    %c0_4 = arith.constant 0 : index
    %c0_5 = arith.constant 0 : index
    %7 = vector.load %arg8[%c0_4, %c0_5] : memref<1x128xf32, #tpu.memory_space<vmem>>, vector<1x128xf32>
    %8 = arith.subf %5, %7 : vector<1x128xf32>
    %9 = math.absf %8 : vector<1x128xf32>
    %c1_i32 = arith.constant 1 : i32
    %10 = tpu.dynamic_rotate %0 by %c1_i32 dim 0 : vector<16x128xf32>, i32 -> vector<16x128xf32>
    %11 = arith.subf %0, %10 : vector<16x128xf32>
    %12 = math.absf %11 : vector<16x128xf32>
    %cst = arith.constant dense<0.000000e+00> : vector<128xf32>
    %13 = vector.multi_reduction <add>, %12, %cst [0] : vector<16x128xf32> to vector<128xf32>
    %14 = vector.shape_cast %13 : vector<128xf32> to vector<1x128xf32>
    %15 = arith.subf %5, %6 : vector<1x128xf32>
    %16 = math.absf %15 : vector<1x128xf32>
    %c0_6 = arith.constant 0 : index
    %c0_7 = arith.constant 0 : index
    %17 = vector.load %arg6[%c0_6, %c0_7] : memref<1x128xf32, #tpu.memory_space<vmem>>, vector<1x128xf32>
    %18 = arith.subf %14, %16 : vector<1x128xf32>
    %19 = arith.addf %18, %9 : vector<1x128xf32>
    %20 = arith.addf %17, %19 : vector<1x128xf32>
    %c0_8 = arith.constant 0 : index
    %c0_9 = arith.constant 0 : index
    %21 = vector.load %arg6[%c0_8, %c0_9] : memref<1x128xf32, #tpu.memory_space<vmem>>, vector<1x128xf32>
    tpu.vector_store %arg6[%c0_8, %c0_9], %20 {strides = array<i32>} : memref<1x128xf32, #tpu.memory_space<vmem>>, vector<1x128xf32>,
    %c0_10 = arith.constant 0 : index
    %c0_11 = arith.constant 0 : index
    %22 = vector.load %arg8[%c0_10, %c0_11] : memref<1x128xf32, #tpu.memory_space<vmem>>, vector<1x128xf32>
    tpu.vector_store %arg8[%c0_10, %c0_11], %6 {strides = array<i32>} : memref<1x128xf32, #tpu.memory_space<vmem>>, vector<1x128xf32>,
    %23 = arith.subf %0, %1 : vector<16x128xf32>
    %c0_12 = arith.constant 0 : index
    %c0_13 = arith.constant 0 : index
    %24 = vector.load %arg7[%c0_12, %c0_13] : memref<1x128xf32, #tpu.memory_space<vmem>>, vector<1x128xf32>
    %25 = arith.mulf %23, %23 : vector<16x128xf32>
    %cst_14 = arith.constant dense<0.000000e+00> : vector<128xf32>
    %26 = vector.multi_reduction <add>, %25, %cst_14 [0] : vector<16x128xf32> to vector<128xf32>
    %27 = vector.shape_cast %26 : vector<128xf32> to vector<1x128xf32>
    %28 = arith.addf %24, %27 : vector<1x128xf32>
    %c0_15 = arith.constant 0 : index
    %c0_16 = arith.constant 0 : index
    %29 = vector.load %arg7[%c0_15, %c0_16] : memref<1x128xf32, #tpu.memory_space<vmem>>, vector<1x128xf32>
    tpu.vector_store %arg7[%c0_15, %c0_16], %28 {strides = array<i32>} : memref<1x128xf32, #tpu.memory_space<vmem>>, vector<1x128xf32>,
    %c2_i32 = arith.constant 2 : i32
    %30 = arith.cmpi eq, %arg1, %c2_i32 : i32
    %31 = arith.extui %30 : i1 to i32
    %c0_i32_17 = arith.constant 0 : i32
    %32 = arith.cmpi ne, %31, %c0_i32_17 : i32
    scf.if %32 {
      %c0_18 = arith.constant 0 : index
      %c0_19 = arith.constant 0 : index
      %33 = vector.load %arg6[%c0_18, %c0_19] : memref<1x128xf32, #tpu.memory_space<vmem>>, vector<1x128xf32>
      %c0_20 = arith.constant 0 : index
      %c0_21 = arith.constant 0 : index
      %34 = vector.load %arg4[%c0_20, %c0_21] : memref<1x128xf32, #tpu.memory_space<vmem>>, vector<1x128xf32>
      tpu.vector_store %arg4[%c0_20, %c0_21], %33 {strides = array<i32>} : memref<1x128xf32, #tpu.memory_space<vmem>>, vector<1x128xf32>,
      %c0_22 = arith.constant 0 : index
      %c0_23 = arith.constant 0 : index
      %35 = vector.load %arg7[%c0_22, %c0_23] : memref<1x128xf32, #tpu.memory_space<vmem>>, vector<1x128xf32>
      %c0_24 = arith.constant 0 : index
      %c0_25 = arith.constant 0 : index
      %36 = vector.load %arg5[%c0_24, %c0_25] : memref<1x128xf32, #tpu.memory_space<vmem>>, vector<1x128xf32>
      tpu.vector_store %arg5[%c0_24, %c0_25], %35 {strides = array<i32>} : memref<1x128xf32, #tpu.memory_space<vmem>>, vector<1x128xf32>,
    } else {
    }
    return
  }
  func.func @transform_0(%arg0: i32, %arg1: i32) -> (i32, i32) {
    %c0_i32 = arith.constant 0 : i32
    return %arg1, %arg0 : i32, i32
  }
  func.func @transform_1(%arg0: i32, %arg1: i32) -> (i32, i32) {
    %c0_i32 = arith.constant 0 : i32
    return %arg1, %arg0 : i32, i32
  }
  func.func @transform_2(%arg0: i32, %arg1: i32) -> (i32, i32) {
    %c0_i32 = arith.constant 0 : i32
    %c0_i32_0 = arith.constant 0 : i32
    return %c0_i32, %arg0 : i32, i32
  }
  func.func @transform_3(%arg0: i32, %arg1: i32) -> (i32, i32) {
    %c0_i32 = arith.constant 0 : i32
    %c0_i32_0 = arith.constant 0 : i32
    return %c0_i32, %arg0 : i32, i32
  }
}

</mosaic_0001>

<llo_original>
// kernel: tpu_custom_call.1
$region0: #{tpu_custom_call.1}
  #allocation0 [shape = 'u32[]', space=smem, size = 0x4, offset = 0x4, fixed_abs, tag = 'smem constant byte address 0x4 - core index']
  #allocation1 [shape = 'u32[144,128]{1,0:T(1,128)}', space=vmem, size = 0x12000, scoped, tag = 'internal scratch']
  #allocation2 [shape = 'f32[1,128]{1,0:T(1,128)}', space=vmem, size = 0x200, scoped, tag = 'scratch operand']
  #allocation3 [shape = 'f32[1,128]{1,0:T(1,128)}', space=vmem, size = 0x200, scoped, tag = 'scratch operand']
  #allocation4 [shape = 'f32[1,128]{1,0:T(1,128)}', space=vmem, size = 0x200, scoped, tag = 'scratch operand']
  %s0 = inlined_call_operand.hbm [shape: f32[48,384], index: 0, kind: input, shape index: {}]
  %s1 = inlined_call_operand.hbm [shape: f32[48,384], index: 1, kind: input, shape index: {}]
  %s2 = inlined_call_operand.hbm [shape: f32[1,384], index: 2, kind: output, shape index: {0}]
  %s3 = inlined_call_operand.hbm [shape: f32[1,384], index: 3, kind: output, shape index: {1}]
  %4 = xla_tuple %s2, %s3
  %s5 = sld [smem:[#allocation0]]
  $region65: #{tpu_custom_call.1} parent=0
    _
  %s7 = ssub.s32 1, %s5
  %s8 = scalar_select 0, %s7, %s5
  $region1: #{tpu_custom_call.1} parent=0
    #allocation5 [shape = 'u8[16384]{0}', space=vmem, size = 0x4000, scoped, tag = 'input window, operand 0']
    #allocation6 [shape = 's32[2]{0}', space=sflag, size = 0x8, scoped, tag = 'scoped memory for tpu_custom_call.1']
    #allocation7 [shape = 's32[2]{0}', space=sflag, size = 0x8, scoped, tag = 'scoped memory for tpu_custom_call.1']
    #allocation8 [shape = 'u8[16384]{0}', space=vmem, size = 0x4000, scoped, tag = 'input window, operand 1']
    #allocation9 [shape = 's32[2]{0}', space=sflag, size = 0x8, scoped, tag = 'scoped memory for tpu_custom_call.1']
    #allocation10 [shape = 'u8[1024]{0}', space=vmem, size = 0x400, scoped, tag = 'output window, operand 0']
    #allocation11 [shape = 'u8[1024]{0}', space=vmem, size = 0x400, scoped, tag = 'output window, operand 1']
    #allocation12 [shape = 's32[2]{0}', space=sflag, size = 0x8, scoped, tag = 'scoped memory for tpu_custom_call.1']
    %9 = vsyncpa [#allocation6], 0
    %s10 = scalar_lea.sflag [#allocation6], 1
    %11 = vsyncpa %s10, 0
    %12 = vsyncpa [#allocation9], 0
    %s13 = scalar_lea.sflag [#allocation9], 1
    %14 = vsyncpa %s13, 0
    %15 = vsyncpa [#allocation7], 0
    %s16 = scalar_lea.sflag [#allocation7], 1
    %17 = vsyncpa %s16, 0
    %18 = vsyncpa [#allocation12], 0
    %s19 = scalar_lea.sflag [#allocation12], 1
    %20 = vsyncpa %s19, 0
    loop: start=0, step=1, limit=11
    $region2: #{tpu_custom_call.1} parent=1 // loop_pre_header
      _
    $region3: #{tpu_custom_call.1} parent=1 // loop_header
      %s22 = sphi 0, %s26
      %p23 = scmp.ge.s32.totalorder %s22, 11
      %s29 = sphi 0, %s41
      %s30 = sphi 0, %s37
      %s31 = sphi 0, %s29
      %s32 = sphi 0, %s30
      %s33 = sphi 0, %s31
      %s34 = sphi 0, %s32
      %s46 = sphi 0, %s48
      %s49 = sphi 0, %s46
      %s50 = sphi 0, %s49
      %s66 = sphi 0, %s50
      %s74 = sphi 0, %s76
      %s77 = sphi 0, %s74
      %s78 = sphi 0, %s77
      %s94 = sphi 0, %s78
      %s100 = sphi 0, %s102
      %s103 = sphi 0, %s100
      %s104 = sphi 0, %s103
      %s120 = sphi 0, %s104
      %s126 = sphi 0, %s128
      %s129 = sphi 0, %s126
      %s130 = sphi 0, %s129
      %s146 = sphi 0, %s130
    $region4: #{tpu_custom_call.1} parent=1 // loop_header_branch
      %25 = sbr.rel (%p23) target = $region8
    $region5: #{tpu_custom_call.1} parent=1 // loop_body
      %s27 = ssub.s32 %s22, 1
      %s28 = ssub.s32 %s22, 2
      %s35 = sadd.s32 1, %s30
      %p36 = scmp.ge.s32.totalorder %s35, 3
      %s37 = scalar_select %p36, 0, %s35
      %s38 = sadd.s32 1, %s29
      %s39 = scalar_select %p36, %s38, %s29
      %p40 = scmp.ge.s32.totalorder %s39, 3
      %s41 = scalar_select %p40, 0, %s39
      %s42 = ssub.s32 %s30, %s37
      %s43 = ssub.s32 %s29, %s41
      %s44 = sor.u32 %s42, %s43
      %p45 = scmp.eq.s32.totalorder %s44, 0
      %s47 = sadd.s32 %s46, 1
      %s48 = scalar_select %p45, %s46, %s47
      %p51 = pneg %p45
      %p52 = scmp.eq.s32.totalorder %s22, 8
      %p53 = por %p51, %p52
      %p54 = scmp.ne.s32.totalorder %s46, %s49
      %p55 = scmp.eq.s32.totalorder %s22, 0
      %p56 = por %p54, %p55
      %p57 = scmp.ne.s32.totalorder %s46, %s49
      %p58 = scmp.eq.s32.totalorder %s27, 8
      %p59 = por %p57, %p58
      %p60 = scmp.ne.s32.totalorder %s49, %s50
      %p61 = scmp.eq.s32.totalorder %s27, 0
      %p62 = por %p60, %p61
      %p63 = scmp.ne.s32.totalorder %s49, %s50
      %p64 = scmp.eq.s32.totalorder %s28, 8
      %p65 = por %p63, %p64
      %p67 = scmp.ne.s32.totalorder %s50, %s66
      %p68 = scmp.eq.s32.totalorder %s28, 0
      %p69 = por %p67, %p68
      %s70 = ssub.s32 %s30, %s37
      %s71 = ssub.s32 %s29, %s41
      %s72 = sor.u32 %s70, %s71
      %p73 = scmp.eq.s32.totalorder %s72, 0
      %s75 = sadd.s32 %s74, 1
      %s76 = scalar_select %p73, %s74, %s75
      %p79 = pneg %p73
      %p80 = scmp.eq.s32.totalorder %s22, 8
      %p81 = por %p79, %p80
      %p82 = scmp.ne.s32.totalorder %s74, %s77
      %p83 = scmp.eq.s32.totalorder %s22, 0
      %p84 = por %p82, %p83
      %p85 = scmp.ne.s32.totalorder %s74, %s77
      %p86 = scmp.eq.s32.totalorder %s27, 8
      %p87 = por %p85, %p86
      %p88 = scmp.ne.s32.totalorder %s77, %s78
      %p89 = scmp.eq.s32.totalorder %s27, 0
      %p90 = por %p88, %p89
      %p91 = scmp.ne.s32.totalorder %s77, %s78
      %p92 = scmp.eq.s32.totalorder %s28, 8
      %p93 = por %p91, %p92
      %p95 = scmp.ne.s32.totalorder %s78, %s94
      %p96 = scmp.eq.s32.totalorder %s28, 0
      %p97 = por %p95, %p96
      %s98 = ssub.s32 %s29, %s41
      %p99 = scmp.eq.s32.totalorder %s98, 0
      %s101 = sadd.s32 %s100, 1
      %s102 = scalar_select %p99, %s100, %s101
      %p105 = pneg %p99
      %p106 = scmp.eq.s32.totalorder %s22, 8
      %p107 = por %p105, %p106
      %p108 = scmp.ne.s32.totalorder %s100, %s103
      %p109 = scmp.eq.s32.totalorder %s22, 0
      %p110 = por %p108, %p109
      %p111 = scmp.ne.s32.totalorder %s100, %s103
      %p112 = scmp.eq.s32.totalorder %s27, 8
      %p113 = por %p111, %p112
      %p114 = scmp.ne.s32.totalorder %s103, %s104
      %p115 = scmp.eq.s32.totalorder %s27, 0
      %p116 = por %p114, %p115
      %p117 = scmp.ne.s32.totalorder %s103, %s104
      %p118 = scmp.eq.s32.totalorder %s28, 8
      %p119 = por %p117, %p118
      %p121 = scmp.ne.s32.totalorder %s104, %s120
      %p122 = scmp.eq.s32.totalorder %s28, 0
      %p123 = por %p121, %p122
      %s124 = ssub.s32 %s29, %s41
      %p125 = scmp.eq.s32.totalorder %s124, 0
      %s127 = sadd.s32 %s126, 1
      %s128 = scalar_select %p125, %s126, %s127
      %p131 = pneg %p125
      %p132 = scmp.eq.s32.totalorder %s22, 8
      %p133 = por %p131, %p132
      %p134 = scmp.ne.s32.totalorder %s126, %s129
      %p135 = scmp.eq.s32.totalorder %s22, 0
      %p136 = por %p134, %p135
      %p137 = scmp.ne.s32.totalorder %s126, %s129
      %p138 = scmp.eq.s32.totalorder %s27, 8
      %p139 = por %p137, %p138
      %p140 = scmp.ne.s32.totalorder %s129, %s130
      %p141 = scmp.eq.s32.totalorder %s27, 0
      %p142 = por %p140, %p141
      %p143 = scmp.ne.s32.totalorder %s129, %s130
      %p144 = scmp.eq.s32.totalorder %s28, 8
      %p145 = por %p143, %p144
      %p147 = scmp.ne.s32.totalorder %s130, %s146
      %p148 = scmp.eq.s32.totalorder %s28, 0
      %p149 = por %p147, %p148
      %p150 = scmp.le.s32.totalorder 1, %s22
      %p151 = scmp.lt.s32.totalorder %s22, 10
      %p152 = pnand %p150, %p151
      %p153 = pneg %p152
      // Predicated region
      $region9: #{tpu_custom_call.1} parent=5 // pred_check
        _
      $region10: #{tpu_custom_call.1} parent=5 // pred_check_branch
        %155 = sbr.rel (%p152) target = $region12
      $region11: #{tpu_custom_call.1} parent=5 // pred_region
        %s156 = ssub.s32 %s22, 1
      $region12: #{tpu_custom_call.1} parent=5 // pred_fallthru
        _
      %p157 = scmp.lt.s32.totalorder %s22, 9
      // Predicated region
      $region13: #{tpu_custom_call.1} parent=5 // pred_check
        %p158 = pneg %p157
      $region14: #{tpu_custom_call.1} parent=5 // pred_check_branch
        %160 = sbr.rel (%p158) target = $region16
      $region15: #{tpu_custom_call.1} parent=5 // pred_region
        // Predicated region
        $region17: #{tpu_custom_call.1} parent=15 // pred_check
          %p161 = pneg %p56
        $region18: #{tpu_custom_call.1} parent=15 // pred_check_branch
          %163 = sbr.rel (%p161) target = $region20
        $region19: #{tpu_custom_call.1} parent=15 // pred_region
          %s164 = sand.u32 %s46, 1
          %s165 = scalar_lea.sflag [#allocation6], %s164
          %s166 = sand.u32 %s46, 1
          %s167 = smul.addr %s166, 16
          %s168 = scalar_lea.vmem [#allocation5], %s167
          %s169 = smul.u32 2, %s30
          %s171 = ssub.s32 256, 256
          %172 = vsyncadd %s165, %s171
          %s173 = smul.addr %s169, 3
          %s174 = sadd.s32 %s29, %s173
          %s175 = smul.addr %s174, 128
          %s176 = scalar_lea.hbm %s0, %s175
          %s177 = sshll.u32 %s168, 4
          %s178 = int_to_ptr.vmem [resolvable:$true] %s177
          %183 = dma.hbm_to_vmem [thread:$0]  %s176, 256, %s178, %s165, 384, 128, 8
        $region20: #{tpu_custom_call.1} parent=15 // pred_fallthru
          _
        // Predicated region
        $region21: #{tpu_custom_call.1} parent=15 // pred_check
          %p184 = pneg %p84
        $region22: #{tpu_custom_call.1} parent=15 // pred_check_branch
          %186 = sbr.rel (%p184) target = $region24
        $region23: #{tpu_custom_call.1} parent=15 // pred_region
          %s187 = sand.u32 %s74, 1
          %s188 = scalar_lea.sflag [#allocation9], %s187
          %s189 = sand.u32 %s74, 1
          %s190 = smul.addr %s189, 16
          %s191 = scalar_lea.vmem [#allocation8], %s190
          %s192 = smul.u32 2, %s30
          %s194 = ssub.s32 256, 256
          %195 = vsyncadd %s188, %s194
          %s196 = smul.addr %s192, 3
          %s197 = sadd.s32 %s29, %s196
          %s198 = smul.addr %s197, 128
          %s199 = scalar_lea.hbm %s1, %s198
          %s200 = sshll.u32 %s191, 4
          %s201 = int_to_ptr.vmem [resolvable:$true] %s200
          %206 = dma.hbm_to_vmem [thread:$0]  %s199, 256, %s201, %s188, 384, 128, 8
        $region24: #{tpu_custom_call.1} parent=15 // pred_fallthru
          _
      $region16: #{tpu_custom_call.1} parent=5 // pred_fallthru
        _
      %p207 = scmp.le.s32.totalorder 1, %s22
      %p208 = scmp.lt.s32.totalorder %s22, 10
      %p209 = pnand %p207, %p208
      %p210 = pneg %p209
      // Predicated region
      $region25: #{tpu_custom_call.1} parent=5 // pred_check
        _
      $region26: #{tpu_custom_call.1} parent=5 // pred_check_branch
        %212 = sbr.rel (%p209) target = $region28
      $region27: #{tpu_custom_call.1} parent=5 // pred_region
        %s213 = ssub.s32 %s22, 1
        %s214 = sand.u32 %s49, 1
        %s215 = scalar_lea.sflag [#allocation6], %s214
        %s216 = sand.u32 %s49, 1
        %s217 = smul.addr %s216, 16
        %s218 = scalar_lea.vmem [#allocation5], %s217
        // Predicated region
        $region29: #{tpu_custom_call.1} parent=27 // pred_check
          %p219 = pneg %p62
        $region30: #{tpu_custom_call.1} parent=27 // pred_check_branch
          %221 = sbr.rel (%p219) target = $region32
        $region31: #{tpu_custom_call.1} parent=27 // pred_region
          %222 = dma.done %s215, 256
        $region32: #{tpu_custom_call.1} parent=27 // pred_fallthru
          _
        %s223 = sand.u32 %s77, 1
        %s224 = scalar_lea.sflag [#allocation9], %s223
        %s225 = sand.u32 %s77, 1
        %s226 = smul.addr %s225, 16
        %s227 = scalar_lea.vmem [#allocation8], %s226
        // Predicated region
        $region33: #{tpu_custom_call.1} parent=27 // pred_check
          %p228 = pneg %p90
        $region34: #{tpu_custom_call.1} parent=27 // pred_check_branch
          %230 = sbr.rel (%p228) target = $region36
        $region35: #{tpu_custom_call.1} parent=27 // pred_region
          %231 = dma.done %s224, 256
        $region36: #{tpu_custom_call.1} parent=27 // pred_fallthru
          _
        %s232 = sand.u32 %s49, 1
        %s233 = scalar_lea.sflag [#allocation6], %s232
        %s234 = sand.u32 %s49, 1
        %s235 = smul.addr %s234, 16
        %s236 = scalar_lea.vmem [#allocation5], %s235
        %p237 = pneg %p62
        %p238 = pneg %p59
        %s239 = sand.u32 %s77, 1
        %s240 = scalar_lea.sflag [#allocation9], %s239
        %s241 = sand.u32 %s77, 1
        %s242 = smul.addr %s241, 16
        %s243 = scalar_lea.vmem [#allocation8], %s242
        %p244 = pneg %p90
        %p245 = pneg %p87
        %p246 = pneg %p116
        %p247 = pneg %p113
        %s248 = sand.u32 %s103, 1
        %s249 = scalar_lea.sflag [#allocation7], %s248
        %s250 = sand.u32 %s103, 1
        %s251 = scalar_lea.vmem [#allocation10], %s250
        %p252 = pneg %p142
        %p253 = pneg %p139
        %s254 = sand.u32 %s129, 1
        %s255 = scalar_lea.sflag [#allocation12], %s254
        %s256 = sand.u32 %s129, 1
        %s257 = scalar_lea.vmem [#allocation11], %s256
        %s258 = smul.u32 2, %s32
        %s259 = smul.u32 2, %s32
        %v260 = vld [vmem:[%s218] sm:$0xff]
        %v261 = vld [vmem:[%s218 + $0x8] sm:$0xff]
        %v262 = vld [vmem:[%s227] sm:$0xff]
        %v263 = vld [vmem:[%s227 + $0x8] sm:$0xff]
        %p264 = scmp.eq.s32.totalorder %s32, 0
        // Predicated region
        $region37: #{tpu_custom_call.1} parent=27 // pred_check
          %p265 = pneg %p264
        $region38: #{tpu_custom_call.1} parent=27 // pred_check_branch
          %267 = sbr.rel (%p265) target = $region40
        $region39: #{tpu_custom_call.1} parent=27 // pred_region
          %268 = vst [vmem:[#allocation2] sm:$0x1] 0.0
          %269 = vst [vmem:[#allocation3] sm:$0x1] 0.0
          %270 = vst [vmem:[#allocation4] sm:$0x1] %v260
        $region40: #{tpu_custom_call.1} parent=27 // pred_fallthru
          _
        %v271 = vld [vmem:[#allocation4] sm:$0x1]
        %v272 = vsub.f32 %v260, %v271
        %v273 = vand.u32 2147483647, %v272
        %v274 = vrot.slane %v260, 7
        %v275 = vrot.slane %v261, 7
        %v276 = vlaneseq
        %v277 = vshrl.u32 %v276, 7
        %vm278 = vcmp.lt.s32.totalorder %v277, 1
        %v279 = vsel %vm278, %v274, %v275
        %v280 = vsel %vm278, %v275, %v274
        %v281 = vsub.f32 %v260, %v280
        %v282 = vsub.f32 %v261, %v279
        %v283 = vand.u32 2147483647, %v281
        %v284 = vand.u32 2147483647, %v282
        %v285 = vadd.f32 %v283, %v284
        %v286 = vrot.slane %v285, 4
        %v287 = vadd.f32 %v285, %v286
        %v288 = vrot.slane %v287, 2
        %v289 = vadd.f32 %v287, %v288
        %v290 = vrot.slane %v289, 1
        %v291 = vadd.f32 %v289, %v290
        %v293 = vrot.slane %v261, 7
        %v295 = vsub.f32 %v260, %v293
        %v296 = vand.u32 2147483647, %v295
        %v297 = vld [vmem:[#allocation2] sm:$0x1]
        %v298 = vsub.f32 %v291, %v296
        %v299 = vadd.f32 %v298, %v273
        %v300 = vadd.f32 %v297, %v299
        %301 = vst [vmem:[#allocation2] sm:$0x1] %v300
        %302 = vst [vmem:[#allocation4 - $0x7] sm:$0x80] %v261
        %v303 = vsub.f32 %v260, %v262
        %v304 = vsub.f32 %v261, %v263
        %v305 = vld [vmem:[#allocation3] sm:$0x1]
        %v306 = vmul.f32 %v303, %v303
        %v307 = vmul.f32 %v304, %v304
        %v308 = vadd.f32 %v306, %v307
        %v309 = vrot.slane %v308, 4
        %v310 = vadd.f32 %v308, %v309
        %v311 = vrot.slane %v310, 2
        %v312 = vadd.f32 %v310, %v311
        %v313 = vrot.slane %v312, 1
        %v314 = vadd.f32 %v312, %v313
        %v315 = vadd.f32 %v305, %v314
        %316 = vst [vmem:[#allocation3] sm:$0x1] %v315
        %p317 = scmp.eq.s32.totalorder %s32, 2
        // Predicated region
        $region41: #{tpu_custom_call.1} parent=27 // pred_check
          %p318 = pneg %p317
        $region42: #{tpu_custom_call.1} parent=27 // pred_check_branch
          %320 = sbr.rel (%p318) target = $region44
        $region43: #{tpu_custom_call.1} parent=27 // pred_region
          %v321 = vld [vmem:[#allocation2] sm:$0x1]
          %322 = vst [vmem:[%s251] sm:$0x1] %v321
          %v323 = vld [vmem:[#allocation3] sm:$0x1]
          %324 = vst [vmem:[%s257] sm:$0x1] %v323
        $region44: #{tpu_custom_call.1} parent=27 // pred_fallthru
          _
        %s325 = sand.u32 %s103, 1
        %s326 = scalar_lea.sflag [#allocation7], %s325
        %s327 = sand.u32 %s103, 1
        %s328 = scalar_lea.vmem [#allocation10], %s327
        %s329 = sand.u32 %s129, 1
        %s330 = scalar_lea.sflag [#allocation12], %s329
        %s331 = sand.u32 %s129, 1
        %s332 = scalar_lea.vmem [#allocation11], %s331
        // Predicated region
        $region45: #{tpu_custom_call.1} parent=27 // pred_check
          %p333 = pneg %p113
        $region46: #{tpu_custom_call.1} parent=27 // pred_check_branch
          %335 = sbr.rel (%p333) target = $region48
        $region47: #{tpu_custom_call.1} parent=27 // pred_region
          %s337 = ssub.s32 16, 16
          %338 = vsyncadd %s326, %s337
          %s339 = smul.addr %s31, 16
          %s340 = scalar_lea.hbm %s2, %s339
          %s342 = sshll.u32 %s328, 4
          %s343 = int_to_ptr.vmem [resolvable:$true] %s342
          %345 = dma.vmem_to_hbm [thread:$0]  %s343, 16, %s340, %s326
        $region48: #{tpu_custom_call.1} parent=27 // pred_fallthru
          _
        // Predicated region
        $region49: #{tpu_custom_call.1} parent=27 // pred_check
          %p346 = pneg %p139
        $region50: #{tpu_custom_call.1} parent=27 // pred_check_branch
          %348 = sbr.rel (%p346) target = $region52
        $region51: #{tpu_custom_call.1} parent=27 // pred_region
          %s350 = ssub.s32 16, 16
          %351 = vsyncadd %s330, %s350
          %s352 = smul.addr %s31, 16
          %s353 = scalar_lea.hbm %s3, %s352
          %s355 = sshll.u32 %s332, 4
          %s356 = int_to_ptr.vmem [resolvable:$true] %s355
          %358 = dma.vmem_to_hbm [thread:$0]  %s356, 16, %s353, %s330
        $region52: #{tpu_custom_call.1} parent=27 // pred_fallthru
          _
      $region28: #{tpu_custom_call.1} parent=5 // pred_fallthru
        _
      %p359 = scmp.le.s32.totalorder 2, %s22
      // Predicated region
      $region53: #{tpu_custom_call.1} parent=5 // pred_check
        %p360 = pneg %p359
      $region54: #{tpu_custom_call.1} parent=5 // pred_check_branch
        %362 = sbr.rel (%p360) target = $region56
      $region55: #{tpu_custom_call.1} parent=5 // pred_region
        %s363 = ssub.s32 %s22, 2
        // Predicated region
        $region57: #{tpu_custom_call.1} parent=55 // pred_check
          %p364 = pneg %p119
        $region58: #{tpu_custom_call.1} parent=55 // pred_check_branch
          %366 = sbr.rel (%p364) target = $region60
        $region59: #{tpu_custom_call.1} parent=55 // pred_region
          %s367 = sand.u32 %s104, 1
          %s368 = scalar_lea.sflag [#allocation7], %s367
          %s369 = sand.u32 %s104, 1
          %s370 = scalar_lea.vmem [#allocation10], %s369
          %371 = dma.done %s368, 16
        $region60: #{tpu_custom_call.1} parent=55 // pred_fallthru
          _
        // Predicated region
        $region61: #{tpu_custom_call.1} parent=55 // pred_check
          %p372 = pneg %p145
        $region62: #{tpu_custom_call.1} parent=55 // pred_check_branch
          %374 = sbr.rel (%p372) target = $region64
        $region63: #{tpu_custom_call.1} parent=55 // pred_region
          %s375 = sand.u32 %s130, 1
          %s376 = scalar_lea.sflag [#allocation12], %s375
          %s377 = sand.u32 %s130, 1
          %s378 = scalar_lea.vmem [#allocation11], %s377
          %379 = dma.done %s376, 16
        $region64: #{tpu_custom_call.1} parent=55 // pred_fallthru
          _
      $region56: #{tpu_custom_call.1} parent=5 // pred_fallthru
        _
    $region6: #{tpu_custom_call.1} parent=1 // loop_footer
      %s26 = sadd.s32 1, %s22
    $region7: #{tpu_custom_call.1} parent=1 // loop_footer_branch
      %21 = sbr.rel target = $region3
    $region8: #{tpu_custom_call.1} parent=1 // loop_exit
      _
    %380 = vsyncpa [#allocation6], 1
    %s381 = scalar_lea.sflag [#allocation6], 1
    %382 = vsyncpa %s381, 1
    %383 = vsyncpa [#allocation9], 1
    %s384 = scalar_lea.sflag [#allocation9], 1
    %385 = vsyncpa %s384, 1
    %386 = vsyncpa [#allocation7], 1
    %s387 = scalar_lea.sflag [#allocation7], 1
    %388 = vsyncpa %s387, 1
    %389 = vsyncpa [#allocation12], 1
    %s390 = scalar_lea.sflag [#allocation12], 1
    %391 = vsyncpa %s390, 1

</llo_original>
